<compile_context>
chip_gen: v7x
topology: tpu7x:2x2x1
jax: 0.10.0
libtpu: 0.0.40
codegen_flags: <defaults>
</compile_context>

<pallas_src>
import functools

import jax
import jax.numpy as jnp
from jax.experimental import pallas as pl
from jax.experimental.pallas import tpu as pltpu

LANE = 128

# Minimum sublane count per dtype (second-to-last block dim granularity).
_SUBLANE_MIN = {
    jnp.dtype(jnp.float32): 8,
    jnp.dtype(jnp.bfloat16): 16,
    jnp.dtype(jnp.float16): 16,
    jnp.dtype(jnp.int8): 32,
}

# ~6 MiB per buffer => ~24 MiB with double-buffered input + output.
_TARGET_BLOCK_BYTES = 6 * 1024 * 1024
# Explicit scoped-VMEM limit: above v5e's 16 MiB default, below every
# generation's physical VMEM (v7x: 64 MiB per TC).
_VMEM_LIMIT_BYTES = 32 * 1024 * 1024
# Below this, kernel launch/pipeline overhead dominates -> use fused jnp.
_MIN_PALLAS_BYTES = 256 * 1024
# Lane width per block for the odd (1, n) slab path (layout-inflated in VMEM,
# so keep it modest: ~1 MiB VMEM per buffer).
_ODD_BLOCK_LANES = 32 * 1024


def _poly_kernel(param_ref, x_ref, o_ref):
    # param_ref lives in SMEM (scalar path).  Horner form: (x + p0)*x + p1.
    p0 = param_ref[0]
    p1 = param_ref[1]
    x = x_ref[...].astype(jnp.float32)
    o_ref[...] = ((x + p0) * x + p1).astype(o_ref.dtype)


@functools.lru_cache(maxsize=1)
def _num_tensorcores():
    """Best-effort TensorCore-per-chip count (1 on v5e/v6e, 2 on v7x)."""
    try:
        info = pltpu.get_tpu_info()
        for attr in ("num_cores", "num_cores_per_chip", "tensorcores_per_chip",
                     "num_tensorcores", "core_count"):
            v = getattr(info, attr, None)
            if isinstance(v, int) and 1 <= v <= 8:
                return min(v, 2)
    except Exception:
        pass
    try:
        kind = jax.devices()[0].device_kind.lower()
        if "v7" in kind or "7x" in kind:
            return 2
    except Exception:
        pass
    return 1


def _fused_ref(x, p0, p1):
    xf = x.astype(jnp.float32)
    return ((xf + p0) * xf + p1).astype(x.dtype)


def net_forward(x, param, use_pallas=None):
    """Pallas equivalent of Net.forward (quadratic branch, always taken).

    x          : float array of any shape (e.g. NCHW).
    param      : float array of shape (2,) or (3,); only param[0:2] are used.
    use_pallas : None = auto heuristic, True = force kernel, False = force jnp.
    """
    orig_shape = x.shape
    orig_dtype = x.dtype
    n = x.size
    dt = jnp.dtype(orig_dtype)
    itemsize = dt.itemsize
    sub = _SUBLANE_MIN.get(dt, 8)
    p = param.astype(jnp.float32)

    if n == 0:
        return x

    # Tiny-input bypass: XLA fuses the elementwise expression at HBM roofline;
    # pallas_call launch + pipeline setup would dominate.
    if use_pallas is False or (use_pallas is None and n * itemsize < _MIN_PALLAS_BYTES):
        return _fused_ref(x, p[0], p[1]).reshape(orig_shape)

    flat = x.reshape(-1)

    # Lane-dense factorization: widest last dim (multiple of 128) dividing n,
    # preferring widths that still give >= `sub` rows.
    width = None
    for cand in (2048, 1024, 512, 256, 128):
        if n % cand == 0 and (n // cand) >= sub:
            width = cand
            break
    if width is None:
        for cand in (2048, 1024, 512, 256, 128):
            if n % cand == 0:
                width = cand
                break

    if width is not None:
        # Main path: (rows, width) slab, blocked along rows.  No pad, no slice.
        x2d = flat.reshape(-1, width)
        rows = x2d.shape[0]
        target_rows = max(sub, _TARGET_BLOCK_BYTES // (width * itemsize))
        block_rows = max(sub, (target_rows // sub) * sub)
        if block_rows >= rows:
            block_rows = rows  # single full-extent block is always legal
            num_tc = _num_tensorcores()
            # Split only on multi-TensorCore chips (v7x megacore), with
            # equal-sized sublane-aligned pieces when possible.
            if num_tc > 1 and rows >= 2 * sub:
                chosen = None
                for k in (num_tc, 2 * num_tc, 4 * num_tc):
                    if rows % (k * sub) == 0:
                        chosen = rows // k
                        break
                if chosen is None:
                    chosen = min(rows, sub * (-(-rows // (num_tc * sub))))
                block_rows = chosen
        block_shape = (block_rows, width)
        grid = (pl.cdiv(rows, block_rows),)
        index_map = lambda i: (i, 0)
    else:
        # Odd path: n is not a multiple of 128.  Use a (1, n) lane slab blocked
        # along the lane axis; the final partial block is masked by Pallas, so
        # there is no pad copy and no output slice.
        x2d = flat.reshape(1, n)
        block_w = n if n <= _ODD_BLOCK_LANES else _ODD_BLOCK_LANES
        block_shape = (1, block_w)
        grid = (pl.cdiv(n, block_w),)
        index_map = lambda i: (0, i)

    out2d = pl.pallas_call(
        _poly_kernel,
        out_shape=jax.ShapeDtypeStruct(x2d.shape, orig_dtype),
        grid_spec=pltpu.PrefetchScalarGridSpec(
            num_scalar_prefetch=0,
            grid=grid,
            in_specs=[
                pl.BlockSpec(memory_space=pltpu.SMEM),   # param (whole, SMEM)
                pl.BlockSpec(block_shape, index_map),    # x tile
            ],
            out_specs=pl.BlockSpec(block_shape, index_map),
        ),
        compiler_params=pltpu.CompilerParams(
            dimension_semantics=("parallel",),
            vmem_limit_bytes=_VMEM_LIMIT_BYTES,
        ),
    )(p, x2d)

    return out2d.reshape(orig_shape)


def net_forward_ref(x, param):
    # Pure-JAX reference mirroring the PyTorch forward (quadratic branch).
    return x * x + param[0] * x + param[1]


if __name__ == "__main__":
    key = jax.random.PRNGKey(0)

    # Deterministic parameter init exactly as in Net.__init__ (mode='sq'):
    param = jnp.array([1.0, -1.0, 1.0], dtype=jnp.float32)

    k1, k2, k3, k4 = jax.random.split(key, 4)

    # 1) Small NCHW input, forced through the Pallas kernel (main slab path).
    x_small = jax.random.normal(k1, (2, 4, 16, 16), dtype=jnp.float32)
    out_small = jax.block_until_ready(net_forward(x_small, param, use_pallas=True))
    ref_small = net_forward_ref(x_small, param)
    assert out_small.shape == x_small.shape and out_small.dtype == x_small.dtype
    assert jnp.allclose(out_small, ref_small, atol=1e-5, rtol=1e-5)

    # 1b) Same input through the auto path (tiny-input XLA-fused bypass).
    out_small_auto = jax.block_until_ready(net_forward(x_small, param))
    assert jnp.allclose(out_small_auto, ref_small, atol=1e-5, rtol=1e-5)

    # 2) Odd element count -> (1, n) lane-slab path, single full-extent block.
    x_odd = jax.random.normal(k2, (2, 3, 5, 7), dtype=jnp.float32)
    out_odd = jax.block_until_ready(net_forward(x_odd, param, use_pallas=True))
    assert jnp.allclose(out_odd, net_forward_ref(x_odd, param), atol=1e-5, rtol=1e-5)

    # 2b) Larger odd count -> exercises the masked partial final block
    #     (no pad copy, no output slice).
    x_odd2 = jax.random.normal(k3, (4, 5, 41, 61), dtype=jnp.float32)
    out_odd2 = jax.block_until_ready(net_forward(x_odd2, param, use_pallas=True))
    assert jnp.allclose(out_odd2, net_forward_ref(x_odd2, param), atol=1e-5, rtol=1e-5)

    # 3) Medium input -> auto path, lane-dense slab, multi-block / megacore split.
    x_med = jax.random.normal(k4, (4, 8, 64, 128), dtype=jnp.float32)
    out_med = jax.block_until_ready(net_forward(x_med, param))
    assert jnp.allclose(out_med, net_forward_ref(x_med, param), atol=1e-5, rtol=1e-5)

    print("KERNEL_OK")
</pallas_src>

<mosaic_0001>
module attributes {stable_mosaic.version = 11 : i64} {
  func.func @_poly_kernel(%arg0: i32, %arg1: memref<3xf32, #tpu.memory_space<smem>>, %arg2: memref<8x256xf32, #tpu.memory_space<vmem>>, %arg3: memref<8x256xf32, #tpu.memory_space<vmem>>) attributes {dimension_semantics = [#tpu.dimension_semantics<parallel>], iteration_bounds = array<i64: 1>, scalar_prefetch = 0 : i64, scratch_operands = 0 : i64, tpu.core_type = #tpu.core_type<tc>, window_params = [{transform_indices = @transform_0, window_bounds = array<i64: 3>}, {transform_indices = @transform_1, window_bounds = array<i64: 8, 256>}, {transform_indices = @transform_2, window_bounds = array<i64: 8, 256>}]} {
    %c0 = arith.constant 0 : index
    %0 = memref.load %arg1[%c0] : memref<3xf32, #tpu.memory_space<smem>>
    %c1 = arith.constant 1 : index
    %1 = memref.load %arg1[%c1] : memref<3xf32, #tpu.memory_space<smem>>
    %c0_0 = arith.constant 0 : index
    %c0_1 = arith.constant 0 : index
    %2 = vector.load %arg2[%c0_0, %c0_1] : memref<8x256xf32, #tpu.memory_space<vmem>>, vector<8x256xf32>
    %3 = vector.broadcast %0 : f32 to vector<8x256xf32>
    %4 = arith.addf %2, %3 : vector<8x256xf32>
    %5 = arith.mulf %4, %2 : vector<8x256xf32>
    %6 = vector.broadcast %1 : f32 to vector<8x256xf32>
    %7 = arith.addf %5, %6 : vector<8x256xf32>
    %c0_2 = arith.constant 0 : index
    %c0_3 = arith.constant 0 : index
    %8 = vector.load %arg3[%c0_2, %c0_3] : memref<8x256xf32, #tpu.memory_space<vmem>>, vector<8x256xf32>
    tpu.vector_store %arg3[%c0_2, %c0_3], %7 {strides = array<i32>} : memref<8x256xf32, #tpu.memory_space<vmem>>, vector<8x256xf32>,
    return
  }
  func.func @transform_0(%arg0: i32) -> i32 {
    %c0_i32 = arith.constant 0 : i32
    %c0_i32_0 = arith.constant 0 : i32
    return %c0_i32 : i32
  }
  func.func @transform_1(%arg0: i32) -> (i32, i32) {
    %c0_i32 = arith.constant 0 : i32
    %c0_i32_0 = arith.constant 0 : i32
    return %arg0, %c0_i32 : i32, i32
  }
  func.func @transform_2(%arg0: i32) -> (i32, i32) {
    %c0_i32 = arith.constant 0 : i32
    %c0_i32_0 = arith.constant 0 : i32
    return %arg0, %c0_i32 : i32, i32
  }
}

</mosaic_0001>

<llo_original>
// kernel: tpu_custom_call.1
$region0: #{tpu_custom_call.1}
  #allocation0 [shape = 'u32[]', space=smem, size = 0x4, offset = 0x4, fixed_abs, tag = 'smem constant byte address 0x4 - core index']
  #allocation1 [shape = 'u32[144,128]{1,0:T(1,128)}', space=vmem, size = 0x12000, scoped, tag = 'internal scratch']
  %s0 = inlined_call_operand.hbm [shape: f32[3], index: 0, kind: input, shape index: {}]
  %s1 = inlined_call_operand.hbm [shape: f32[8,256], index: 1, kind: input, shape index: {}]
  %s2 = inlined_call_operand.hbm [shape: f32[8,256], index: 2, kind: output, shape index: {}]
  %s3 = sld [smem:[#allocation0]]
  $region26: #{tpu_custom_call.1} parent=0
    _
  %s5 = ssub.s32 1, %s3
  %s6 = scalar_select 0, %s5, %s3
  $region1: #{tpu_custom_call.1} parent=0
    #allocation2 [shape = 'u8[512]{0}', space=smem, size = 0x200, scoped, tag = 'input window, operand 0, single buffered']
    #allocation3 [shape = 's32[1]{0}', space=sflag, size = 0x4, scoped, tag = 'scoped memory for tpu_custom_call.1']
    #allocation4 [shape = 's32[1]{0}', space=sflag, size = 0x4, scoped, tag = 'scoped memory for tpu_custom_call.1']
    #allocation5 [shape = 's32[1]{0}', space=sflag, size = 0x4, scoped, tag = 'scoped memory for tpu_custom_call.1']
    #allocation6 [shape = 'u8[8192]{0}', space=vmem, size = 0x2000, scoped, tag = 'input window, operand 1, single buffered']
    #allocation7 [shape = 'u8[8192]{0}', space=vmem, size = 0x2000, scoped, tag = 'output window, operand 0, single buffered']
    %7 = vsyncpa [#allocation5], 0
    %8 = vsyncpa [#allocation3], 0
    %9 = vsyncpa [#allocation4], 0
    // Predicated region
    $region2: #{tpu_custom_call.1} parent=1 // pred_check
      _
    $region3: #{tpu_custom_call.1} parent=1 // pred_check_branch
      %11 = sbr.rel (0) target = $region5
    $region4: #{tpu_custom_call.1} parent=1 // pred_region
      %s13 = ssub.s32 16, 16
      %14 = vsyncadd [#allocation5], %s13
      %17 = dma.hbm_to_smem %s0, 16, [#allocation2], [#allocation5]
    $region5: #{tpu_custom_call.1} parent=1 // pred_fallthru
      _
    // Predicated region
    $region6: #{tpu_custom_call.1} parent=1 // pred_check
      _
    $region7: #{tpu_custom_call.1} parent=1 // pred_check_branch
      %19 = sbr.rel (0) target = $region9
    $region8: #{tpu_custom_call.1} parent=1 // pred_region
      %s21 = ssub.s32 256, 256
      %22 = vsyncadd [#allocation3], %s21
      %s24 = sshll.u32 [#allocation6], 4
      %s25 = int_to_ptr.vmem [resolvable:$true] %s24
      %27 = dma.hbm_to_vmem [thread:$0]  %s1, 256, %s25, [#allocation3]
    $region9: #{tpu_custom_call.1} parent=1 // pred_fallthru
      _
    // Predicated region
    $region10: #{tpu_custom_call.1} parent=1 // pred_check
      _
    $region11: #{tpu_custom_call.1} parent=1 // pred_check_branch
      %29 = sbr.rel (0) target = $region13
    $region12: #{tpu_custom_call.1} parent=1 // pred_region
      %30 = dma.done [#allocation5], 16
    $region13: #{tpu_custom_call.1} parent=1 // pred_fallthru
      _
    // Predicated region
    $region14: #{tpu_custom_call.1} parent=1 // pred_check
      _
    $region15: #{tpu_custom_call.1} parent=1 // pred_check_branch
      %32 = sbr.rel (0) target = $region17
    $region16: #{tpu_custom_call.1} parent=1 // pred_region
      %33 = dma.done [#allocation3], 256
    $region17: #{tpu_custom_call.1} parent=1 // pred_fallthru
      _
    %34 = sfence
    %s35 = sld [smem:[#allocation2]]
    %s36 = sld [smem:[#allocation2 + $0x1]]
    %v37 = vld [vmem:[#allocation6] sm:$0xff]
    %v38 = vld [vmem:[#allocation6 + $0x8] sm:$0xff]
    %v39 = vstv %s35
    %v40 = vadd.f32 %v37, %v39
    %v41 = vadd.f32 %v38, %v39
    %v42 = vmul.f32 %v40, %v37
    %v43 = vmul.f32 %v41, %v38
    %v44 = vstv %s36
    %v45 = vadd.f32 %v42, %v44
    %v46 = vadd.f32 %v43, %v44
    %47 = vst [vmem:[#allocation7] sm:$0xff] %v45
    %48 = vst [vmem:[#allocation7 + $0x8] sm:$0xff] %v46
    // Predicated region
    $region18: #{tpu_custom_call.1} parent=1 // pred_check
      _
    $region19: #{tpu_custom_call.1} parent=1 // pred_check_branch
      %50 = sbr.rel (0) target = $region21
    $region20: #{tpu_custom_call.1} parent=1 // pred_region
      %s52 = ssub.s32 256, 256
      %53 = vsyncadd [#allocation4], %s52
      %s55 = sshll.u32 [#allocation7], 4
      %s56 = int_to_ptr.vmem [resolvable:$true] %s55
      %58 = dma.vmem_to_hbm [thread:$0]  %s56, 256, %s2, [#allocation4]
    $region21: #{tpu_custom_call.1} parent=1 // pred_fallthru
      _
    // Predicated region
    $region22: #{tpu_custom_call.1} parent=1 // pred_check
      _
    $region23: #{tpu_custom_call.1} parent=1 // pred_check_branch
      %60 = sbr.rel (0) target = $region25
    $region24: #{tpu_custom_call.1} parent=1 // pred_region
      %61 = dma.done [#allocation4], 256
    $region25: #{tpu_custom_call.1} parent=1 // pred_fallthru
      _
    %62 = vsyncpa [#allocation3], 1
    %63 = vsyncpa [#allocation4], 1
    %64 = vsyncpa [#allocation5], 1

</llo_original>
